<compile_context>
chip_gen: v5e
topology: v5e:2x2
jax: 0.10.0
libtpu: 0.0.40
codegen_flags: <defaults>
</compile_context>

<pallas_src>
import functools
import math

import jax
import jax.numpy as jnp
from jax.experimental import pallas as pl
from jax.experimental.pallas import tpu as pltpu


def _layernorm_kernel(x_ref, gb_ref, o_ref, *, eps: float, n_valid: int):
    # x_ref: (tile_rows, embed_pad); gb_ref: (2, embed_pad) = [gamma; beta]
    x = x_ref[...].astype(jnp.float32)
    gb = gb_ref[...].astype(jnp.float32)
    gamma = gb[0:1, :]
    beta = gb[1:2, :]

    n = jnp.float32(n_valid)
    # One-pass statistics. Zero-padded lanes (columns >= n_valid) contribute
    # nothing to either sum, so dividing by the true n gives exact mean/var.
    s1 = jnp.sum(x, axis=-1, keepdims=True)
    s2 = jnp.sum(x * x, axis=-1, keepdims=True)
    mean = s1 / n
    # torch.std default: unbiased estimator (divide by N-1); guard embed==1.
    denom = jnp.float32(max(n_valid - 1, 1))
    var = (s2 - n * mean * mean) / denom
    var = jnp.maximum(var, 0.0)  # guard tiny negatives from cancellation
    std = jnp.sqrt(var)

    inv = pl.reciprocal(std + jnp.float32(eps), approx=True)  # EUP slot, ~free
    y = (x - mean) * inv
    out = gamma * y + beta
    o_ref[...] = out.astype(o_ref.dtype)


def layernorm_pallas(x, gamma, beta, eps: float = 1e-6,
                     vmem_budget_bytes: int = 20 * 1024 * 1024):
    """LayerNorm over the last axis of x using a Pallas TPU kernel.

    x:     (..., embed)
    gamma: (embed,)
    beta:  (embed,)
    """
    orig_shape = x.shape
    embed = orig_shape[-1]
    rows = math.prod(orig_shape[:-1])  # == 1 for a 1-D input

    x2 = x.reshape(rows, embed)
    g = gamma.reshape(embed)
    b = beta.reshape(embed)

    # ---- Lane-dense embed: pad last dim to a multiple of 128 (zero pad). ----
    embed_pad = max(128, ((embed + 127) // 128) * 128)
    if embed_pad != embed:
        pad_e = embed_pad - embed
        x2 = jnp.pad(x2, ((0, 0), (0, pad_e)))
        g = jnp.pad(g, (0, pad_e))
        b = jnp.pad(b, (0, pad_e))
    gb = jnp.stack([g, b], axis=0)  # (2, embed_pad); one small constant DMA

    # ---- Row tile from a VMEM budget. Stays under the 32 MiB scoped default
    #      on every generation (v5e/v6e: 128 MiB physical, v7x: 64 MiB). ------
    dtype_bytes = jnp.dtype(x.dtype).itemsize
    per_row = (2 * 2 * embed_pad * dtype_bytes    # in + out tiles, 2 buffers each
               + 2 * embed_pad * 4)               # f32 working temps in kernel
    tr = vmem_budget_bytes // per_row
    tr = max(8, min(1024, (tr // 8) * 8))

    rows8 = ((rows + 7) // 8) * 8
    tr = min(tr, rows8)
    # Keep >= 2 grid steps when there is enough work so v7x's two TensorCores
    # both get row tiles.
    if rows8 >= 16 and rows8 // tr < 2:
        tr = max(8, ((rows8 // 2) // 8) * 8)

    grid_len = pl.cdiv(rows, tr)
    rows_pad = grid_len * tr
    if rows_pad != rows:
        # Padded rows produce harmless values (discarded below); no NaNs since
        # the reciprocal argument is std + eps >= eps.
        x2 = jnp.pad(x2, ((0, rows_pad - rows), (0, 0)))

    out = pl.pallas_call(
        functools.partial(_layernorm_kernel, eps=eps, n_valid=embed),
        out_shape=jax.ShapeDtypeStruct((rows_pad, embed_pad), x.dtype),
        grid_spec=pltpu.PrefetchScalarGridSpec(
            num_scalar_prefetch=0,
            grid=(grid_len,),
            in_specs=[
                pl.BlockSpec((tr, embed_pad), lambda i: (i, 0)),   # x tile
                pl.BlockSpec((2, embed_pad), lambda i: (0, 0)),    # [gamma;beta]
            ],
            out_specs=pl.BlockSpec((tr, embed_pad), lambda i: (i, 0)),
        ),
        compiler_params=pltpu.CompilerParams(
            dimension_semantics=("parallel",),
        ),
    )(x2, gb)

    out = out[:rows, :embed]
    return out.reshape(orig_shape)


def layernorm_ref(x, gamma, beta, eps: float = 1e-6):
    """Pure-JAX reference matching the PyTorch forward exactly."""
    xf = x.astype(jnp.float32)
    mean = jnp.mean(xf, axis=-1, keepdims=True)
    std = jnp.sqrt(jnp.var(xf, axis=-1, keepdims=True, ddof=1))  # unbiased
    y = (xf - mean) / (std + eps)
    return (gamma * y + beta).astype(x.dtype)


if __name__ == "__main__":
    key = jax.random.PRNGKey(0)

    batch, seq, embed = 2, 8, 32
    x = jax.random.normal(key, (batch, seq, embed), dtype=jnp.float32)

    # Deterministic parameters, matching nn.Parameter(torch.ones/zeros(embed)).
    gamma = jnp.ones((embed,), dtype=jnp.float32)
    beta = jnp.zeros((embed,), dtype=jnp.float32)

    out = layernorm_pallas(x, gamma, beta, eps=1e-6)
    out = jax.block_until_ready(out)

    ref = layernorm_ref(x, gamma, beta, eps=1e-6)
    assert out.shape == x.shape and out.dtype == x.dtype
    # approx=True EUP reciprocal -> slightly loosened tolerance (~1e-3 rel).
    assert jnp.allclose(out, ref, atol=5e-3, rtol=5e-3), "mismatch vs reference"

    print("KERNEL_OK")
</pallas_src>

<mosaic_0001>
module attributes {stable_mosaic.version = 11 : i64} {
  func.func @_layernorm_kernel(%arg0: i32, %arg1: memref<8x128xf32, #tpu.memory_space<vmem>>, %arg2: memref<2x128xf32, #tpu.memory_space<vmem>>, %arg3: memref<8x128xf32, #tpu.memory_space<vmem>>) attributes {dimension_semantics = [#tpu.dimension_semantics<parallel>], iteration_bounds = array<i64: 2>, scalar_prefetch = 0 : i64, scratch_operands = 0 : i64, tpu.core_type = #tpu.core_type<tc>, window_params = [{transform_indices = @transform_0, window_bounds = array<i64: 8, 128>}, {pipeline_mode = #tpu.pipeline_mode<synchronous>, transform_indices = @transform_1, window_bounds = array<i64: 2, 128>}, {transform_indices = @transform_2, window_bounds = array<i64: 8, 128>}]} {
    %c0 = arith.constant 0 : index
    %c0_0 = arith.constant 0 : index
    %0 = vector.load %arg1[%c0, %c0_0] : memref<8x128xf32, #tpu.memory_space<vmem>>, vector<8x128xf32>
    %c0_1 = arith.constant 0 : index
    %c0_2 = arith.constant 0 : index
    %1 = vector.load %arg2[%c0_1, %c0_2] : memref<2x128xf32, #tpu.memory_space<vmem>>, vector<2x128xf32>
    %2 = vector.extract_strided_slice %1 {offsets = [0, 0], sizes = [1, 128], strides = [1, 1]} : vector<2x128xf32> to vector<1x128xf32>
    %3 = vector.extract_strided_slice %1 {offsets = [1, 0], sizes = [1, 128], strides = [1, 1]} : vector<2x128xf32> to vector<1x128xf32>
    %cst = arith.constant dense<0.000000e+00> : vector<8xf32>
    %4 = vector.multi_reduction <add>, %0, %cst [1] : vector<8x128xf32> to vector<8xf32>
    %5 = vector.shape_cast %4 : vector<8xf32> to vector<8x1xf32>
    %6 = arith.mulf %0, %0 : vector<8x128xf32>
    %cst_3 = arith.constant dense<0.000000e+00> : vector<8xf32>
    %7 = vector.multi_reduction <add>, %6, %cst_3 [1] : vector<8x128xf32> to vector<8xf32>
    %8 = vector.shape_cast %7 : vector<8xf32> to vector<8x1xf32>
    %cst_4 = arith.constant 3.200000e+01 : f32
    %9 = vector.broadcast %cst_4 : f32 to vector<8x1xf32>
    %10 = arith.divf %5, %9 : vector<8x1xf32>
    %cst_5 = arith.constant 3.200000e+01 : f32
    %11 = vector.broadcast %cst_5 : f32 to vector<8x1xf32>
    %12 = arith.mulf %11, %10 : vector<8x1xf32>
    %13 = arith.mulf %12, %10 : vector<8x1xf32>
    %14 = arith.subf %8, %13 : vector<8x1xf32>
    %cst_6 = arith.constant 3.100000e+01 : f32
    %15 = vector.broadcast %cst_6 : f32 to vector<8x1xf32>
    %16 = arith.divf %14, %15 : vector<8x1xf32>
    %cst_7 = arith.constant 0.000000e+00 : f32
    %17 = vector.broadcast %cst_7 : f32 to vector<8x1xf32>
    %18 = arith.maximumf %16, %17 : vector<8x1xf32>
    %19 = math.sqrt %18 : vector<8x1xf32>
    %cst_8 = arith.constant 9.99999997E-7 : f32
    %20 = vector.broadcast %cst_8 : f32 to vector<8x1xf32>
    %21 = arith.addf %19, %20 : vector<8x1xf32>
    %22 = tpu.reciprocal %21 {approx = true} : vector<8x1xf32> -> vector<8x1xf32>
    %23 = vector.broadcast %10 : vector<8x1xf32> to vector<8x128xf32>
    %24 = arith.subf %0, %23 : vector<8x128xf32>
    %25 = vector.broadcast %22 : vector<8x1xf32> to vector<8x128xf32>
    %26 = arith.mulf %24, %25 : vector<8x128xf32>
    %27 = vector.broadcast %2 : vector<1x128xf32> to vector<8x128xf32>
    %28 = arith.mulf %27, %26 : vector<8x128xf32>
    %29 = vector.broadcast %3 : vector<1x128xf32> to vector<8x128xf32>
    %30 = arith.addf %28, %29 : vector<8x128xf32>
    %c0_9 = arith.constant 0 : index
    %c0_10 = arith.constant 0 : index
    %31 = vector.load %arg3[%c0_9, %c0_10] : memref<8x128xf32, #tpu.memory_space<vmem>>, vector<8x128xf32>
    tpu.vector_store %arg3[%c0_9, %c0_10], %30 {strides = array<i32>} : memref<8x128xf32, #tpu.memory_space<vmem>>, vector<8x128xf32>,
    return
  }
  func.func @transform_0(%arg0: i32) -> (i32, i32) {
    %c0_i32 = arith.constant 0 : i32
    %c0_i32_0 = arith.constant 0 : i32
    return %arg0, %c0_i32 : i32, i32
  }
  func.func @transform_1(%arg0: i32) -> (i32, i32) {
    %c0_i32 = arith.constant 0 : i32
    %c0_i32_0 = arith.constant 0 : i32
    %c0_i32_1 = arith.constant 0 : i32
    return %c0_i32, %c0_i32_0 : i32, i32
  }
  func.func @transform_2(%arg0: i32) -> (i32, i32) {
    %c0_i32 = arith.constant 0 : i32
    %c0_i32_0 = arith.constant 0 : i32
    return %arg0, %c0_i32 : i32, i32
  }
}

</mosaic_0001>

<llo_original>
// kernel: tpu_custom_call.1
$region0: #{tpu_custom_call.1}
  #allocation0 [shape = 'u32[]', space=smem, size = 0x4, offset = 0x4, fixed_abs, tag = 'smem constant byte address 0x4 - core index']
  #allocation1 [shape = 'u32[72,128]{1,0:T(1,128)}', space=vmem, size = 0x9000, scoped, tag = 'internal scratch']
  %s0 = inlined_call_operand.hbm [shape: f32[16,128], index: 0, kind: input, shape index: {}]
  %s1 = inlined_call_operand.hbm [shape: f32[2,128], index: 1, kind: input, shape index: {}]
  %s2 = inlined_call_operand.hbm [shape: f32[16,128], index: 2, kind: output, shape index: {}]
  %s3 = sld [smem:[#allocation0]]
  $region49: #{tpu_custom_call.1} parent=0
    _
  %s5 = ssub.s32 1, %s3
  %s6 = scalar_select 0, %s5, %s3
  $region1: #{tpu_custom_call.1} parent=0
    #allocation2 [shape = 'u8[8192]{0}', space=vmem, size = 0x2000, scoped, tag = 'input window, operand 0']
    #allocation3 [shape = 's32[2]{0}', space=sflag, size = 0x8, scoped, tag = 'scoped memory for tpu_custom_call.1']
    #allocation4 [shape = 's32[2]{0}', space=sflag, size = 0x8, scoped, tag = 'scoped memory for tpu_custom_call.1']
    #allocation5 [shape = 'u8[1024]{0}', space=vmem, size = 0x400, scoped, tag = 'input window, operand 1, single buffered']
    #allocation6 [shape = 's32[1]{0}', space=sflag, size = 0x4, scoped, tag = 'scoped memory for tpu_custom_call.1']
    #allocation7 [shape = 'u8[8192]{0}', space=vmem, size = 0x2000, scoped, tag = 'output window, operand 0']
    %7 = vsyncpa [#allocation3], 0
    %s8 = scalar_lea.sflag [#allocation3], 1
    %9 = vsyncpa %s8, 0
    %10 = vsyncpa [#allocation6], 0
    %11 = vsyncpa [#allocation4], 0
    %s12 = scalar_lea.sflag [#allocation4], 1
    %13 = vsyncpa %s12, 0
    loop: start=0, step=1, limit=4
    $region2: #{tpu_custom_call.1} parent=1 // loop_pre_header
      _
    $region3: #{tpu_custom_call.1} parent=1 // loop_header
      %s15 = sphi 0, %s19
      %p16 = scmp.ge.s32.totalorder %s15, 4
      %s25 = sphi 0, %s27
      %s28 = sphi 0, %s25
      %s29 = sphi 0, %s28
      %s45 = sphi 0, %s29
      %s49 = sphi 0, %s49
      %s51 = sphi 0, %s49
      %s52 = sphi 0, %s51
      %s66 = sphi 0, %s52
      %s72 = sphi 0, %s74
      %s75 = sphi 0, %s72
      %s76 = sphi 0, %s75
      %s92 = sphi 0, %s76
    $region4: #{tpu_custom_call.1} parent=1 // loop_header_branch
      %18 = sbr.rel (%p16) target = $region8
    $region5: #{tpu_custom_call.1} parent=1 // loop_body
      %s20 = ssub.s32 %s15, 1
      %s21 = ssub.s32 %s15, 2
      %s22 = sadd.s32 %s15, 1
      %s23 = ssub.s32 %s15, %s22
      %p24 = scmp.eq.s32.totalorder %s23, 0
      %s26 = sadd.s32 %s25, 1
      %s27 = scalar_select %p24, %s25, %s26
      %p30 = pneg %p24
      %p31 = scmp.eq.s32.totalorder %s15, 1
      %p32 = por %p30, %p31
      %p33 = scmp.ne.s32.totalorder %s25, %s28
      %p34 = scmp.eq.s32.totalorder %s15, 0
      %p35 = por %p33, %p34
      %p36 = scmp.ne.s32.totalorder %s25, %s28
      %p37 = scmp.eq.s32.totalorder %s20, 1
      %p38 = por %p36, %p37
      %p39 = scmp.ne.s32.totalorder %s28, %s29
      %p40 = scmp.eq.s32.totalorder %s20, 0
      %p41 = por %p39, %p40
      %p42 = scmp.ne.s32.totalorder %s28, %s29
      %p43 = scmp.eq.s32.totalorder %s21, 1
      %p44 = por %p42, %p43
      %p46 = scmp.ne.s32.totalorder %s29, %s45
      %p47 = scmp.eq.s32.totalorder %s21, 0
      %p48 = por %p46, %p47
      %s50 = sadd.s32 %s49, 1
      %p53 = scmp.eq.s32.totalorder %s15, 1
      %p54 = scmp.ne.s32.totalorder %s49, %s51
      %p55 = scmp.eq.s32.totalorder %s15, 0
      %p56 = por %p54, %p55
      %p57 = scmp.ne.s32.totalorder %s49, %s51
      %p58 = scmp.eq.s32.totalorder %s20, 1
      %p59 = por %p57, %p58
      %p60 = scmp.ne.s32.totalorder %s51, %s52
      %p61 = scmp.eq.s32.totalorder %s20, 0
      %p62 = por %p60, %p61
      %p63 = scmp.ne.s32.totalorder %s51, %s52
      %p64 = scmp.eq.s32.totalorder %s21, 1
      %p65 = por %p63, %p64
      %p67 = scmp.ne.s32.totalorder %s52, %s66
      %p68 = scmp.eq.s32.totalorder %s21, 0
      %p69 = por %p67, %p68
      %s70 = ssub.s32 %s15, %s22
      %p71 = scmp.eq.s32.totalorder %s70, 0
      %s73 = sadd.s32 %s72, 1
      %s74 = scalar_select %p71, %s72, %s73
      %p77 = pneg %p71
      %p78 = scmp.eq.s32.totalorder %s15, 1
      %p79 = por %p77, %p78
      %p80 = scmp.ne.s32.totalorder %s72, %s75
      %p81 = scmp.eq.s32.totalorder %s15, 0
      %p82 = por %p80, %p81
      %p83 = scmp.ne.s32.totalorder %s72, %s75
      %p84 = scmp.eq.s32.totalorder %s20, 1
      %p85 = por %p83, %p84
      %p86 = scmp.ne.s32.totalorder %s75, %s76
      %p87 = scmp.eq.s32.totalorder %s20, 0
      %p88 = por %p86, %p87
      %p89 = scmp.ne.s32.totalorder %s75, %s76
      %p90 = scmp.eq.s32.totalorder %s21, 1
      %p91 = por %p89, %p90
      %p93 = scmp.ne.s32.totalorder %s76, %s92
      %p94 = scmp.eq.s32.totalorder %s21, 0
      %p95 = por %p93, %p94
      %p96 = scmp.le.s32.totalorder 1, %s15
      %p97 = scmp.lt.s32.totalorder %s15, 3
      %p98 = pnand %p96, %p97
      %p99 = pneg %p98
      // Predicated region
      $region9: #{tpu_custom_call.1} parent=5 // pred_check
        _
      $region10: #{tpu_custom_call.1} parent=5 // pred_check_branch
        %101 = sbr.rel (%p98) target = $region12
      $region11: #{tpu_custom_call.1} parent=5 // pred_region
        %s102 = ssub.s32 %s15, 1
        // Predicated region
        $region13: #{tpu_custom_call.1} parent=11 // pred_check
          %p103 = pneg %p62
        $region14: #{tpu_custom_call.1} parent=11 // pred_check_branch
          %105 = sbr.rel (%p103) target = $region16
        $region15: #{tpu_custom_call.1} parent=11 // pred_region
          %107 = vsyncadd [#allocation6], 0
          %s109 = sshll.u32 %s1, 4
          %s110 = int_to_ptr.hbm [resolvable:$true] %s109
          %s111 = sshll.u32 [#allocation5], 4
          %s112 = int_to_ptr.vmem [resolvable:$true] %s111
          %114 = dma.hbm_to_vmem [thread:$0]  %s110, 32, %s112, [#allocation6]
        $region16: #{tpu_custom_call.1} parent=11 // pred_fallthru
          _
      $region12: #{tpu_custom_call.1} parent=5 // pred_fallthru
        _
      %p115 = scmp.lt.s32.totalorder %s15, 2
      // Predicated region
      $region17: #{tpu_custom_call.1} parent=5 // pred_check
        %p116 = pneg %p115
      $region18: #{tpu_custom_call.1} parent=5 // pred_check_branch
        %118 = sbr.rel (%p116) target = $region20
      $region19: #{tpu_custom_call.1} parent=5 // pred_region
        // Predicated region
        $region21: #{tpu_custom_call.1} parent=19 // pred_check
          %p119 = pneg %p35
        $region22: #{tpu_custom_call.1} parent=19 // pred_check_branch
          %121 = sbr.rel (%p119) target = $region24
        $region23: #{tpu_custom_call.1} parent=19 // pred_region
          %s122 = sand.u32 %s25, 1
          %s123 = scalar_lea.sflag [#allocation3], %s122
          %s124 = sand.u32 %s25, 1
          %s125 = smul.addr %s124, 8
          %s126 = scalar_lea.vmem [#allocation2], %s125
          %128 = vsyncadd %s123, 0
          %s129 = smul.addr %s15, 8
          %s130 = scalar_lea.hbm %s0, %s129
          %s132 = sshll.u32 %s130, 4
          %s133 = int_to_ptr.hbm [resolvable:$true] %s132
          %s134 = sshll.u32 %s126, 4
          %s135 = int_to_ptr.vmem [resolvable:$true] %s134
          %137 = dma.hbm_to_vmem [thread:$0]  %s133, 128, %s135, %s123
        $region24: #{tpu_custom_call.1} parent=19 // pred_fallthru
          _
      $region20: #{tpu_custom_call.1} parent=5 // pred_fallthru
        _
      %p138 = scmp.le.s32.totalorder 1, %s15
      %p139 = scmp.lt.s32.totalorder %s15, 3
      %p140 = pnand %p138, %p139
      %p141 = pneg %p140
      // Predicated region
      $region25: #{tpu_custom_call.1} parent=5 // pred_check
        _
      $region26: #{tpu_custom_call.1} parent=5 // pred_check_branch
        %143 = sbr.rel (%p140) target = $region28
      $region27: #{tpu_custom_call.1} parent=5 // pred_region
        %s144 = ssub.s32 %s15, 1
        %s145 = sand.u32 %s28, 1
        %s146 = scalar_lea.sflag [#allocation3], %s145
        %s147 = sand.u32 %s28, 1
        %s148 = smul.addr %s147, 8
        %s149 = scalar_lea.vmem [#allocation2], %s148
        // Predicated region
        $region29: #{tpu_custom_call.1} parent=27 // pred_check
          %p150 = pneg %p41
        $region30: #{tpu_custom_call.1} parent=27 // pred_check_branch
          %152 = sbr.rel (%p150) target = $region32
        $region31: #{tpu_custom_call.1} parent=27 // pred_region
          %154 = dma.done %s146, 128
        $region32: #{tpu_custom_call.1} parent=27 // pred_fallthru
          _
        // Predicated region
        $region33: #{tpu_custom_call.1} parent=27 // pred_check
          %p155 = pneg %p62
        $region34: #{tpu_custom_call.1} parent=27 // pred_check_branch
          %157 = sbr.rel (%p155) target = $region36
        $region35: #{tpu_custom_call.1} parent=27 // pred_region
          %159 = dma.done [#allocation6], 32
        $region36: #{tpu_custom_call.1} parent=27 // pred_fallthru
          _
        %s160 = sand.u32 %s28, 1
        %s161 = scalar_lea.sflag [#allocation3], %s160
        %s162 = sand.u32 %s28, 1
        %s163 = smul.addr %s162, 8
        %s164 = scalar_lea.vmem [#allocation2], %s163
        %p165 = pneg %p41
        %p166 = pneg %p38
        %p167 = pneg %p62
        %p168 = pneg %p59
        %p169 = pneg %p88
        %p170 = pneg %p85
        %s171 = sand.u32 %s75, 1
        %s172 = scalar_lea.sflag [#allocation4], %s171
        %s173 = sand.u32 %s75, 1
        %s174 = smul.addr %s173, 8
        %s175 = scalar_lea.vmem [#allocation7], %s174
        %v176 = vld [vmem:[%s149] sm:$0xff]
        %v177 = vld [vmem:[#allocation5] sm:$0x3]
        %178 = vadd.xlane.f32.xlu0 %v176
        %v179 = vpop.xlane.xlu0 %178
        %v180 = vmul.f32 %v176, %v176
        %181 = vadd.xlane.f32.xlu0 %v180
        %v182 = vpop.xlane.xlu0 %181
        %v183 = vrcp.pop 32.0
        %v184 = vmul.f32 32.0, %v183
        %v185 = vsub.f32 1.0, %v184
        %v186 = vmul.f32 %v183, %v185
        %v187 = vadd.f32 %v183, %v186
        %vm188 = vweird.f32 %v183
        %v189 = vsel %vm188, %v183, %v187
        %v190 = vmul.f32 %v179, %v189
        %v191 = vmul.f32 %v190, 32.0
        %v192 = vmul.f32 %v191, %v190
        %v193 = vsub.f32 %v182, %v192
        %v194 = vrcp.pop 31.0
        %v195 = vmul.f32 31.0, %v194
        %v196 = vsub.f32 1.0, %v195
        %v197 = vmul.f32 %v194, %v196
        %v198 = vadd.f32 %v194, %v197
        %vm199 = vweird.f32 %v194
        %v200 = vsel %vm199, %v194, %v198
        %v201 = vmul.f32 %v193, %v200
        %v202 = vmax.f32 %v201, 0.0
        %v203 = vrsqrt.pop %v202
        %v204 = vmul.f32 %v203, %v202
        %v205 = vmul.f32 %v204, %v203
        %v206 = vmul.f32 0.5, %v205
        %v207 = vsub.f32 1.5, %v206
        %v208 = vmul.f32 %v203, %v207
        %v209 = vmul.f32 %v202, %v208
        %vm210 = vcmp.eq.f32.partialorder %v202, inf
        %v211 = vsel %vm210, %v202, %v209
        %vm212 = vcmp.eq.f32.partialorder %v202, 0.0
        %v213 = vand.u32 %v202, 2147483648
        %v214 = vsel %vm212, %v213, %v211
        %v215 = vadd.f32 %v214, 1e-06
        %v216 = vrcp.pop %v215
        %v217 = vsub.f32 %v176, %v190
        %v218 = vmul.f32 %v217, %v216
        %v219 = vperm.slane %v177, 0
        %v220 = vmul.f32 %v219, %v218
        %v221 = vperm.slane %v177, 1
        %v222 = vadd.f32 %v220, %v221
        %223 = vst [vmem:[%s175] sm:$0xff] %v222
        %s224 = sand.u32 %s75, 1
        %s225 = scalar_lea.sflag [#allocation4], %s224
        %s226 = sand.u32 %s75, 1
        %s227 = smul.addr %s226, 8
        %s228 = scalar_lea.vmem [#allocation7], %s227
        // Predicated region
        $region37: #{tpu_custom_call.1} parent=27 // pred_check
          %p229 = pneg %p85
        $region38: #{tpu_custom_call.1} parent=27 // pred_check_branch
          %231 = sbr.rel (%p229) target = $region40
        $region39: #{tpu_custom_call.1} parent=27 // pred_region
          %233 = vsyncadd %s225, 0
          %s234 = smul.addr %s20, 8
          %s235 = scalar_lea.hbm %s2, %s234
          %s237 = sshll.u32 %s228, 4
          %s238 = int_to_ptr.vmem [resolvable:$true] %s237
          %s239 = sshll.u32 %s235, 4
          %s240 = int_to_ptr.hbm [resolvable:$true] %s239
          %242 = dma.vmem_to_hbm [thread:$0]  %s238, 128, %s240, %s225
        $region40: #{tpu_custom_call.1} parent=27 // pred_fallthru
          _
      $region28: #{tpu_custom_call.1} parent=5 // pred_fallthru
        _
      %p243 = scmp.le.s32.totalorder 2, %s15
      // Predicated region
      $region41: #{tpu_custom_call.1} parent=5 // pred_check
        %p244 = pneg %p243
      $region42: #{tpu_custom_call.1} parent=5 // pred_check_branch
        %246 = sbr.rel (%p244) target = $region44
      $region43: #{tpu_custom_call.1} parent=5 // pred_region
        %s247 = ssub.s32 %s15, 2
        // Predicated region
        $region45: #{tpu_custom_call.1} parent=43 // pred_check
          %p248 = pneg %p91
        $region46: #{tpu_custom_call.1} parent=43 // pred_check_branch
          %250 = sbr.rel (%p248) target = $region48
        $region47: #{tpu_custom_call.1} parent=43 // pred_region
          %s251 = sand.u32 %s76, 1
          %s252 = scalar_lea.sflag [#allocation4], %s251
          %s253 = sand.u32 %s76, 1
          %s254 = smul.addr %s253, 8
          %s255 = scalar_lea.vmem [#allocation7], %s254
          %257 = dma.done %s252, 128
        $region48: #{tpu_custom_call.1} parent=43 // pred_fallthru
          _
      $region44: #{tpu_custom_call.1} parent=5 // pred_fallthru
        _
    $region6: #{tpu_custom_call.1} parent=1 // loop_footer
      %s19 = sadd.s32 1, %s15
    $region7: #{tpu_custom_call.1} parent=1 // loop_footer_branch
      %14 = sbr.rel target = $region3
    $region8: #{tpu_custom_call.1} parent=1 // loop_exit
      _
    %258 = vsyncpa [#allocation3], 1
    %s259 = scalar_lea.sflag [#allocation3], 1
    %260 = vsyncpa %s259, 1
    %261 = vsyncpa [#allocation6], 1
    %262 = vsyncpa [#allocation4], 1
    %s263 = scalar_lea.sflag [#allocation4], 1
    %264 = vsyncpa %s263, 1

</llo_original>
